<compile_context>
chip_gen: v7x
topology: tpu7x:2x2x1
jax: 0.10.0
libtpu: 0.0.40
codegen_flags: <defaults>
</compile_context>

<pallas_src>
import jax
import jax.numpy as jnp
from jax.experimental import pallas as pl
from jax.experimental.pallas import tpu as pltpu


# ---------------------------------------------------------------------------
# Pallas kernel: the full elementwise hot path of PGLU.forward
# ---------------------------------------------------------------------------
def pglu_kernel(x_ref, pot_ref, param_ref, act_ref, png_ref):
    pot = pot_ref[...] + x_ref[...]            # (TB, TH)  potential' = potential + x
    tresh = param_ref[0:1, :]                  # (1, TH) broadcasts over batch axis
    decay = param_ref[1:2, :]
    mask = pot > tresh                         # relu(pot'-tresh) > 0  <=>  pot' > tresh
    act_ref[...] = jnp.where(mask, pot, 0)                    # gated branch
    png_ref[...] = jnp.where(mask, 0, pot * decay)            # non-gated * decay


# ---------------------------------------------------------------------------
# Wrapper helpers
# ---------------------------------------------------------------------------
def _tpu_vmem_capacity_bytes():
    """Physical VMEM per core; conservative fallback if the query fails."""
    try:
        return int(pltpu.get_tpu_info().vmem_capacity_bytes)
    except Exception:
        return 64 << 20   # v7x per-TC physical; safe lower bound everywhere


def _pick_tile(dim, target, align):
    """Full extent if it fits (always legal).  Otherwise prefer the largest
    align-multiple <= target that divides `dim` exactly (no partial trailing
    tile -> no masked stores / padded DMAs); fall back to the largest
    align-multiple <= target."""
    if dim <= target:
        return dim
    top = max((target // align) * align, align)
    for cand in range(top, align - 1, -align):
        if dim % cand == 0:
            return cand
    return top


def pglu_forward(x, potential, tresh, decay_rate, *,
                 tile_b=None, tile_h=None,
                 donate_potential=False, donate_x=False):
    """x, potential: (B, H); tresh, decay_rate: (H,).
    Returns (activated, potential_non_gated)."""
    B, H = x.shape
    dtype = x.dtype
    itemsize = jnp.dtype(dtype).itemsize
    sub_align = 8 * max(1, 4 // itemsize)          # 8 for f32, 16 for bf16

    # ---- generation-aware block sizing -------------------------------------
    vmem_cap = _tpu_vmem_capacity_bytes()
    if vmem_cap >= (100 << 20):                    # v5e / v6e: 128 MiB VMEM
        target_block_bytes = 4 << 20
    else:                                          # v7x: 64 MiB per TC
        target_block_bytes = 2 << 20

    th = _pick_tile(H, tile_h if tile_h is not None else 2048, 128)
    if tile_b is not None:
        tb_target = tile_b
    else:
        tb_target = max(sub_align,
                        (target_block_bytes // (th * itemsize)) // sub_align * sub_align)
    tb = _pick_tile(B, tb_target, sub_align)

    # 4 (B,H)-streams double-buffered + one small packed param block.
    def working_bytes(tb_, th_):
        return (4 * 2 * tb_ * th_ + 2 * 2 * th_) * itemsize

    budget = max(16 << 20, vmem_cap // 2)          # keep headroom for Mosaic scratch
    while working_bytes(tb, th) > budget and tb > sub_align:
        tb = max(sub_align, ((tb // 2) // sub_align) * sub_align)
    while working_bytes(tb, th) > budget and th > 128:
        th = max(128, ((th // 2) // 128) * 128)
    working = working_bytes(tb, th)
    vmem_limit = int(min(max(2 * working, 16 << 20), budget))

    gh = pl.cdiv(H, th)
    gb = pl.cdiv(B, tb)

    # Packed per-channel params: row 0 = tresh, row 1 = decay.
    # (Cast to input dtype, mirroring the torch math; if bit-parity against an
    #  f32 reference matters for bf16 inputs, keep params in f32 instead.)
    param2d = jnp.stack([tresh.astype(dtype), decay_rate.astype(dtype)], axis=0)  # (2, H)

    # ---- grid ordering: keep params resident AND give megacore a real axis --
    if gh >= 2:
        # H outer / batch innermost: (2, th) param block only changes once per
        # full batch sweep -> effectively VMEM-resident.  Leading axis gh >= 2
        # so the core-sharded axis always has work.
        grid = (gh, gb)
        data_spec = lambda: pl.BlockSpec((tb, th), lambda h, b: (b, h))
        param_spec = pl.BlockSpec((2, th), lambda h, b: (0, h))
    else:
        # Single H tile: params are constant anyway; put batch first so the
        # sharded leading axis has extent even for skinny-H / large-B inputs.
        grid = (gb, gh)
        data_spec = lambda: pl.BlockSpec((tb, th), lambda b, h: (b, h))
        param_spec = pl.BlockSpec((2, th), lambda b, h: (0, h))

    out_shape = (jax.ShapeDtypeStruct((B, H), dtype),
                 jax.ShapeDtypeStruct((B, H), dtype))

    aliases = {}
    if donate_x:
        aliases[0] = 0          # x (input 0)         -> activated (output 0)
    if donate_potential:
        aliases[1] = 1          # potential (input 1) -> pot_ng    (output 1)
    extra = {"input_output_aliases": aliases} if aliases else {}

    return pl.pallas_call(
        pglu_kernel,
        out_shape=out_shape,
        grid=grid,
        in_specs=[data_spec(), data_spec(), param_spec],
        out_specs=(data_spec(), data_spec()),
        compiler_params=pltpu.CompilerParams(
            dimension_semantics=("parallel", "parallel"),
            vmem_limit_bytes=vmem_limit,
        ),
        **extra,
    )(x, potential, param2d)


# ---------------------------------------------------------------------------
# Pure-JAX reference (mirrors the PyTorch forward) + size-aware dispatcher
# ---------------------------------------------------------------------------
def pglu_ref(x, potential, tresh, decay_rate):
    potential = potential + x
    treshed = potential - tresh[None, :]
    gated = jnp.maximum(treshed, 0.0)
    gated_bool = (gated > 0).astype(x.dtype)
    non_gated_bool = (gated == 0).astype(x.dtype)
    activated = gated_bool * potential
    potential_non_gated = potential * non_gated_bool * decay_rate[None, :]
    return activated, potential_non_gated


def pglu(x, potential, tresh, decay_rate, *, min_pallas_bytes=None):
    """Tiny problems: let XLA fuse the elementwise ops (pallas_call overhead
    dominates). Large problems: Pallas tiled kernel (HBM-bandwidth bound)."""
    if min_pallas_bytes is None:
        # Faster HBM (v7x, smaller VMEM) -> fixed overhead matters further up.
        min_pallas_bytes = (4 << 20) if _tpu_vmem_capacity_bytes() < (100 << 20) else (1 << 20)
    if x.size * jnp.dtype(x.dtype).itemsize < min_pallas_bytes:
        return pglu_ref(x, potential, tresh, decay_rate)
    return pglu_forward(x, potential, tresh, decay_rate)


# ---------------------------------------------------------------------------
# Deterministic parameter init (mirror of scaled_bell_distribution_capped_at_2_times_sigma)
# ---------------------------------------------------------------------------
def scaled_bell_capped_at_2_sigma(key, n, center, sigma):
    vals = center + sigma * jax.random.normal(key, (n,), dtype=jnp.float32)
    return jnp.clip(vals, center - 2.0 * sigma, center + 2.0 * sigma)


if __name__ == "__main__":
    key = jax.random.PRNGKey(0)

    # --- 1) Small shape consistent with the module (hidden_size=32, batch=4) ---
    B, H = 4, 32
    key, k_x, k_p, k_t, k_d = jax.random.split(key, 5)
    x = jax.random.normal(k_x, (B, H), dtype=jnp.float32)
    potential = jax.random.normal(k_p, (B, H), dtype=jnp.float32)
    # params.init_tresh_center=1.0, sigma=0.25; init_decay_center=0.9, sigma=0.05
    tresh = scaled_bell_capped_at_2_sigma(k_t, H, 1.0, 0.25)
    decay_rate = scaled_bell_capped_at_2_sigma(k_d, H, 0.9, 0.05)

    act, png = pglu_forward(x, potential, tresh, decay_rate)
    jax.block_until_ready((act, png))
    r_act, r_png = pglu_ref(x, potential, tresh, decay_rate)
    assert jnp.allclose(act, r_act, atol=1e-6), "activated mismatch (small)"
    assert jnp.allclose(png, r_png, atol=1e-6), "potential_non_gated mismatch (small)"

    # --- 2) Larger shape exercising the tiled multi-block grid (H-outer path) ---
    B2, H2 = 1024, 4096
    key, k_x2, k_p2, k_t2, k_d2 = jax.random.split(key, 5)
    x2 = jax.random.normal(k_x2, (B2, H2), dtype=jnp.float32)
    potential2 = jax.random.normal(k_p2, (B2, H2), dtype=jnp.float32)
    tresh2 = scaled_bell_capped_at_2_sigma(k_t2, H2, 1.0, 0.25)
    decay2 = scaled_bell_capped_at_2_sigma(k_d2, H2, 0.9, 0.05)

    act2, png2 = pglu_forward(x2, potential2, tresh2, decay2)
    jax.block_until_ready((act2, png2))
    r_act2, r_png2 = pglu_ref(x2, potential2, tresh2, decay2)
    assert jnp.allclose(act2, r_act2, atol=1e-6), "activated mismatch (tiled)"
    assert jnp.allclose(png2, r_png2, atol=1e-6), "potential_non_gated mismatch (tiled)"

    # --- 3) Skinny-H / large-B path (single H tile, batch-first grid) ---------
    B3, H3 = 2048, 256
    key, k_x3, k_p3, k_t3, k_d3 = jax.random.split(key, 5)
    x3 = jax.random.normal(k_x3, (B3, H3), dtype=jnp.float32)
    potential3 = jax.random.normal(k_p3, (B3, H3), dtype=jnp.float32)
    tresh3 = scaled_bell_capped_at_2_sigma(k_t3, H3, 1.0, 0.25)
    decay3 = scaled_bell_capped_at_2_sigma(k_d3, H3, 0.9, 0.05)

    act3, png3 = pglu_forward(x3, potential3, tresh3, decay3)
    jax.block_until_ready((act3, png3))
    r_act3, r_png3 = pglu_ref(x3, potential3, tresh3, decay3)
    assert jnp.allclose(act3, r_act3, atol=1e-6), "activated mismatch (skinny-H)"
    assert jnp.allclose(png3, r_png3, atol=1e-6), "potential_non_gated mismatch (skinny-H)"

    # TODO(synk): BumpFunction / InvertedBumpFunction custom backward
    # (straight-through surrogate gradients) is not part of the forward pass
    # and is not implemented here.
    print("KERNEL_OK")
</pallas_src>

<mosaic_0001>
module attributes {stable_mosaic.version = 11 : i64} {
  func.func @pglu_kernel(%arg0: i32, %arg1: i32, %arg2: memref<4x32xf32, #tpu.memory_space<vmem>>, %arg3: memref<4x32xf32, #tpu.memory_space<vmem>>, %arg4: memref<2x32xf32, #tpu.memory_space<vmem>>, %arg5: memref<4x32xf32, #tpu.memory_space<vmem>>, %arg6: memref<4x32xf32, #tpu.memory_space<vmem>>) attributes {dimension_semantics = [#tpu.dimension_semantics<parallel>, #tpu.dimension_semantics<parallel>], iteration_bounds = array<i64: 1, 1>, scalar_prefetch = 0 : i64, scratch_operands = 0 : i64, tpu.core_type = #tpu.core_type<tc>, window_params = [{transform_indices = @transform_0, window_bounds = array<i64: 4, 32>}, {transform_indices = @transform_1, window_bounds = array<i64: 4, 32>}, {transform_indices = @transform_2, window_bounds = array<i64: 2, 32>}, {transform_indices = @transform_3, window_bounds = array<i64: 4, 32>}, {transform_indices = @transform_4, window_bounds = array<i64: 4, 32>}]} {
    %c0 = arith.constant 0 : index
    %c0_0 = arith.constant 0 : index
    %0 = vector.load %arg3[%c0, %c0_0] : memref<4x32xf32, #tpu.memory_space<vmem>>, vector<4x32xf32>
    %c0_1 = arith.constant 0 : index
    %c0_2 = arith.constant 0 : index
    %1 = vector.load %arg2[%c0_1, %c0_2] : memref<4x32xf32, #tpu.memory_space<vmem>>, vector<4x32xf32>
    %2 = arith.addf %0, %1 : vector<4x32xf32>
    %c0_3 = arith.constant 0 : index
    %c0_4 = arith.constant 0 : index
    %3 = vector.load %arg4[%c0_3, %c0_4] : memref<2x32xf32, #tpu.memory_space<vmem>>, vector<1x32xf32>
    %c1 = arith.constant 1 : index
    %c0_5 = arith.constant 0 : index
    %4 = vector.load %arg4[%c1, %c0_5] : memref<2x32xf32, #tpu.memory_space<vmem>>, vector<1x32xf32>
    %5 = vector.broadcast %3 : vector<1x32xf32> to vector<4x32xf32>
    %6 = arith.cmpf ogt, %2, %5 : vector<4x32xf32>
    %c0_i32 = arith.constant 0 : i32
    %7 = arith.sitofp %c0_i32 : i32 to f32
    %8 = vector.broadcast %7 : f32 to vector<4x32xf32>
    %9 = arith.select %6, %2, %8 : vector<4x32xi1>, vector<4x32xf32>
    %c0_6 = arith.constant 0 : index
    %c0_7 = arith.constant 0 : index
    %10 = vector.load %arg5[%c0_6, %c0_7] : memref<4x32xf32, #tpu.memory_space<vmem>>, vector<4x32xf32>
    tpu.vector_store %arg5[%c0_6, %c0_7], %9 {strides = array<i32>} : memref<4x32xf32, #tpu.memory_space<vmem>>, vector<4x32xf32>,
    %11 = vector.broadcast %4 : vector<1x32xf32> to vector<4x32xf32>
    %12 = arith.mulf %2, %11 : vector<4x32xf32>
    %c0_i32_8 = arith.constant 0 : i32
    %13 = arith.sitofp %c0_i32_8 : i32 to f32
    %14 = vector.broadcast %13 : f32 to vector<4x32xf32>
    %15 = arith.select %6, %14, %12 : vector<4x32xi1>, vector<4x32xf32>
    %c0_9 = arith.constant 0 : index
    %c0_10 = arith.constant 0 : index
    %16 = vector.load %arg6[%c0_9, %c0_10] : memref<4x32xf32, #tpu.memory_space<vmem>>, vector<4x32xf32>
    tpu.vector_store %arg6[%c0_9, %c0_10], %15 {strides = array<i32>} : memref<4x32xf32, #tpu.memory_space<vmem>>, vector<4x32xf32>,
    return
  }
  func.func @transform_0(%arg0: i32, %arg1: i32) -> (i32, i32) {
    %c0_i32 = arith.constant 0 : i32
    return %arg0, %arg1 : i32, i32
  }
  func.func @transform_1(%arg0: i32, %arg1: i32) -> (i32, i32) {
    %c0_i32 = arith.constant 0 : i32
    return %arg0, %arg1 : i32, i32
  }
  func.func @transform_2(%arg0: i32, %arg1: i32) -> (i32, i32) {
    %c0_i32 = arith.constant 0 : i32
    %c0_i32_0 = arith.constant 0 : i32
    return %c0_i32, %arg1 : i32, i32
  }
  func.func @transform_3(%arg0: i32, %arg1: i32) -> (i32, i32) {
    %c0_i32 = arith.constant 0 : i32
    return %arg0, %arg1 : i32, i32
  }
  func.func @transform_4(%arg0: i32, %arg1: i32) -> (i32, i32) {
    %c0_i32 = arith.constant 0 : i32
    return %arg0, %arg1 : i32, i32
  }
}

</mosaic_0001>

<llo_original>
// kernel: tpu_custom_call.1
$region0: #{tpu_custom_call.1}
  #allocation0 [shape = 'u32[]', space=smem, size = 0x4, offset = 0x4, fixed_abs, tag = 'smem constant byte address 0x4 - core index']
  #allocation1 [shape = 'u32[144,128]{1,0:T(1,128)}', space=vmem, size = 0x12000, scoped, tag = 'internal scratch']
  %s0 = inlined_call_operand.hbm [shape: f32[4,32], index: 0, kind: input, shape index: {}]
  %s1 = inlined_call_operand.hbm [shape: f32[4,32], index: 1, kind: input, shape index: {}]
  %s2 = inlined_call_operand.vmem [shape: f32[2,32], index: 2, kind: input, shape index: {}]
  %s3 = inlined_call_operand.hbm [shape: f32[4,32], index: 3, kind: output, shape index: {0}]
  %s4 = inlined_call_operand.hbm [shape: f32[4,32], index: 4, kind: output, shape index: {1}]
  %5 = xla_tuple %s3, %s4
  %s6 = sld [smem:[#allocation0]]
  $region38: #{tpu_custom_call.1} parent=0
    _
  %s8 = ssub.s32 1, %s6
  %s9 = scalar_select 0, %s8, %s6
  $region1: #{tpu_custom_call.1} parent=0
    #allocation2 [shape = 'u8[2048]{0}', space=vmem, size = 0x800, scoped, tag = 'input window, operand 0, single buffered']
    #allocation3 [shape = 's32[1]{0}', space=sflag, size = 0x4, scoped, tag = 'scoped memory for tpu_custom_call.1']
    #allocation4 [shape = 's32[1]{0}', space=sflag, size = 0x4, scoped, tag = 'scoped memory for tpu_custom_call.1']
    #allocation5 [shape = 'u8[2048]{0}', space=vmem, size = 0x800, scoped, tag = 'input window, operand 1, single buffered']
    #allocation6 [shape = 's32[1]{0}', space=sflag, size = 0x4, scoped, tag = 'scoped memory for tpu_custom_call.1']
    #allocation7 [shape = 'u8[2048]{0}', space=vmem, size = 0x800, scoped, tag = 'output window, operand 0, single buffered']
    #allocation8 [shape = 'u8[2048]{0}', space=vmem, size = 0x800, scoped, tag = 'output window, operand 1, single buffered']
    #allocation9 [shape = 's32[1]{0}', space=sflag, size = 0x4, scoped, tag = 'scoped memory for tpu_custom_call.1']
    %10 = vsyncpa [#allocation3], 0
    %11 = vsyncpa [#allocation6], 0
    %12 = vsyncpa [#allocation4], 0
    %13 = vsyncpa [#allocation9], 0
    // Predicated region
    $region2: #{tpu_custom_call.1} parent=1 // pred_check
      _
    $region3: #{tpu_custom_call.1} parent=1 // pred_check_branch
      %15 = sbr.rel (0) target = $region5
    $region4: #{tpu_custom_call.1} parent=1 // pred_region
      %s17 = ssub.s32 64, 64
      %18 = vsyncadd [#allocation3], %s17
      %s20 = sshll.u32 [#allocation2], 4
      %s21 = int_to_ptr.vmem [resolvable:$true] %s20
      %23 = dma.hbm_to_vmem [thread:$0]  %s0, 64, %s21, [#allocation3]
    $region5: #{tpu_custom_call.1} parent=1 // pred_fallthru
      _
    // Predicated region
    $region6: #{tpu_custom_call.1} parent=1 // pred_check
      _
    $region7: #{tpu_custom_call.1} parent=1 // pred_check_branch
      %25 = sbr.rel (0) target = $region9
    $region8: #{tpu_custom_call.1} parent=1 // pred_region
      %s27 = ssub.s32 64, 64
      %28 = vsyncadd [#allocation6], %s27
      %s30 = sshll.u32 [#allocation5], 4
      %s31 = int_to_ptr.vmem [resolvable:$true] %s30
      %33 = dma.hbm_to_vmem [thread:$0]  %s1, 64, %s31, [#allocation6]
    $region9: #{tpu_custom_call.1} parent=1 // pred_fallthru
      _
    // Predicated region
    $region10: #{tpu_custom_call.1} parent=1 // pred_check
      _
    $region11: #{tpu_custom_call.1} parent=1 // pred_check_branch
      %35 = sbr.rel (0) target = $region13
    $region12: #{tpu_custom_call.1} parent=1 // pred_region
      _
    $region13: #{tpu_custom_call.1} parent=1 // pred_fallthru
      _
    // Predicated region
    $region14: #{tpu_custom_call.1} parent=1 // pred_check
      _
    $region15: #{tpu_custom_call.1} parent=1 // pred_check_branch
      %37 = sbr.rel (0) target = $region17
    $region16: #{tpu_custom_call.1} parent=1 // pred_region
      %38 = dma.done [#allocation3], 64
    $region17: #{tpu_custom_call.1} parent=1 // pred_fallthru
      _
    // Predicated region
    $region18: #{tpu_custom_call.1} parent=1 // pred_check
      _
    $region19: #{tpu_custom_call.1} parent=1 // pred_check_branch
      %40 = sbr.rel (0) target = $region21
    $region20: #{tpu_custom_call.1} parent=1 // pred_region
      %41 = dma.done [#allocation6], 64
    $region21: #{tpu_custom_call.1} parent=1 // pred_fallthru
      _
    %v42 = vld [vmem:[#allocation5] sm:$0xf]
    %v43 = vld [vmem:[#allocation2] sm:$0xf]
    %v44 = vadd.f32 %v42, %v43
    %v45 = vld [vmem:[%s2] sm:$0x1]
    %v46 = vld [vmem:[%s2 + $0x1] sm:$0x1]
    %v47 = vlaneseq
    %v48 = vshrl.u32 %v47, 7
    %v49 = vsub.s32 0, %v48
    %v50 = vrot.slane %v45, %v49
    %vm51 = vcmp.gt.f32.partialorder %v44, %v50
    %v52 = vsel %vm51, %v44, 0.0
    %vm53 = vcmask 257024
    %54 = vst.msk [vmem:[#allocation7] sm:$0xf] %vm53, %v52
    %v55 = vlaneseq
    %v56 = vshrl.u32 %v55, 7
    %v57 = vsub.s32 0, %v56
    %v58 = vrot.slane %v46, %v57
    %v59 = vmul.f32 %v44, %v58
    %v60 = vsel %vm51, 0.0, %v59
    %61 = vst.msk [vmem:[#allocation8] sm:$0xf] %vm53, %v60
    // Predicated region
    $region22: #{tpu_custom_call.1} parent=1 // pred_check
      _
    $region23: #{tpu_custom_call.1} parent=1 // pred_check_branch
      %63 = sbr.rel (0) target = $region25
    $region24: #{tpu_custom_call.1} parent=1 // pred_region
      %s65 = ssub.s32 64, 64
      %66 = vsyncadd [#allocation4], %s65
      %s68 = sshll.u32 [#allocation7], 4
      %s69 = int_to_ptr.vmem [resolvable:$true] %s68
      %71 = dma.vmem_to_hbm [thread:$0]  %s69, 64, %s3, [#allocation4]
    $region25: #{tpu_custom_call.1} parent=1 // pred_fallthru
      _
    // Predicated region
    $region26: #{tpu_custom_call.1} parent=1 // pred_check
      _
    $region27: #{tpu_custom_call.1} parent=1 // pred_check_branch
      %73 = sbr.rel (0) target = $region29
    $region28: #{tpu_custom_call.1} parent=1 // pred_region
      %s75 = ssub.s32 64, 64
      %76 = vsyncadd [#allocation9], %s75
      %s78 = sshll.u32 [#allocation8], 4
      %s79 = int_to_ptr.vmem [resolvable:$true] %s78
      %81 = dma.vmem_to_hbm [thread:$0]  %s79, 64, %s4, [#allocation9]
    $region29: #{tpu_custom_call.1} parent=1 // pred_fallthru
      _
    // Predicated region
    $region30: #{tpu_custom_call.1} parent=1 // pred_check
      _
    $region31: #{tpu_custom_call.1} parent=1 // pred_check_branch
      %83 = sbr.rel (0) target = $region33
    $region32: #{tpu_custom_call.1} parent=1 // pred_region
      %84 = dma.done [#allocation4], 64
    $region33: #{tpu_custom_call.1} parent=1 // pred_fallthru
      _
    // Predicated region
    $region34: #{tpu_custom_call.1} parent=1 // pred_check
      _
    $region35: #{tpu_custom_call.1} parent=1 // pred_check_branch
      %86 = sbr.rel (0) target = $region37
    $region36: #{tpu_custom_call.1} parent=1 // pred_region
      %87 = dma.done [#allocation9], 64
    $region37: #{tpu_custom_call.1} parent=1 // pred_fallthru
      _
    %88 = vsyncpa [#allocation3], 1
    %89 = vsyncpa [#allocation6], 1
    %90 = vsyncpa [#allocation4], 1
    %91 = vsyncpa [#allocation9], 1

</llo_original>
